<compile_context>
chip_gen: v5e
topology: v5e:2x2
jax: 0.10.0
libtpu: 0.0.40
codegen_flags: <defaults>
</compile_context>

<pallas_src>
import functools

import jax
import jax.numpy as jnp
from jax.experimental import pallas as pl
from jax.experimental.pallas import tpu as pltpu


def _discriminator_kernel(x_ref, *refs, n_layers, relu_slope):
    """Fused MLP over one batch tile.

    refs = (w1, w2, ..., wN, bias_cat, out_ref)
      x_ref:     (TB, in_pad)        bf16
      wI:        (in_pad_I, out_pad_I) bf16  (resident, zero-padded)
      bias_cat:  (1, sum(out_pad_I)) f32     (resident, zero-padded)
      out_ref:   (TB, out_pad_last)  f32     (lane-dense; real logit in col 0)
    """
    w_refs = refs[:n_layers]
    b_ref = refs[n_layers]
    out_ref = refs[n_layers + 1]

    h = x_ref[...]  # bf16 activations feed the MXU
    off = 0
    for i in range(n_layers):
        w = w_refs[i][...]
        p = w.shape[1]
        # MXU matmul with f32 accumulation; bias add in f32.
        acc = jnp.dot(h, w, preferred_element_type=jnp.float32)
        acc = acc + b_ref[:, off:off + p]
        off += p
        if i < n_layers - 1:  # activation on all but the final (logit) layer
            if relu_slope > 0.0:
                acc = jnp.where(acc > 0, acc, relu_slope * acc)  # LeakyReLU (f32)
            else:
                acc = jnp.maximum(acc, 0.0)                      # ReLU (f32)
            h = acc.astype(jnp.bfloat16)  # back to bf16 for next MXU pass
        else:
            out_ref[...] = acc.astype(out_ref.dtype)


def _pad_to(n, m):
    return ((n + m - 1) // m) * m


def discriminator_forward(x, weights, biases, relu_slope, tile_b=512):
    """x: (B, z_size) f32. weights[i]: (in_i, out_i) f32. biases[i]: (1, out_i) f32.

    Returns (B, 1) f32 logits, matching the PyTorch module (y = x @ W.T + b per layer).
    """
    n_layers = len(weights)
    B, z = x.shape
    dims = [z] + [w.shape[1] for w in weights]
    # Pad every feature dim to a multiple of 128 lanes.
    pdims = [_pad_to(d, 128) for d in dims]

    # Zero-pad weights and cast to bf16 (padded rows/cols are exact zeros, so
    # padded lanes stay zero through every layer and don't perturb real outputs).
    w_pad = []
    for i, w in enumerate(weights):
        wp = jnp.zeros((pdims[i], pdims[i + 1]), jnp.float32)
        wp = wp.at[: w.shape[0], : w.shape[1]].set(w)
        w_pad.append(wp.astype(jnp.bfloat16))

    # Concatenate zero-padded biases into one resident f32 array (single DMA).
    b_parts = []
    for i, b in enumerate(biases):
        bp = jnp.zeros((1, pdims[i + 1]), jnp.float32)
        bp = bp.at[:, : b.shape[1]].set(b)
        b_parts.append(bp)
    b_cat = jnp.concatenate(b_parts, axis=1)

    # Batch tiling: TB rows per grid step (sublane-aligned), batch padded up.
    TB = min(tile_b, _pad_to(B, 8))
    B_pad = _pad_to(B, TB)
    x_p = jnp.zeros((B_pad, pdims[0]), jnp.float32)
    x_p = x_p.at[:B, :z].set(x).astype(jnp.bfloat16)

    out_pad = pdims[-1]
    grid = (B_pad // TB,)

    in_specs = [pl.BlockSpec((TB, pdims[0]), lambda i: (i, 0))]
    # Weights / biases: constant block index -> fetched once, resident across grid.
    in_specs += [pl.BlockSpec(w.shape, lambda i: (0, 0)) for w in w_pad]
    in_specs += [pl.BlockSpec(b_cat.shape, lambda i: (0, 0))]

    kernel = functools.partial(
        _discriminator_kernel, n_layers=n_layers, relu_slope=relu_slope
    )

    out = pl.pallas_call(
        kernel,
        out_shape=jax.ShapeDtypeStruct((B_pad, out_pad), jnp.float32),
        grid=grid,
        in_specs=in_specs,
        out_specs=pl.BlockSpec((TB, out_pad), lambda i: (i, 0)),
        compiler_params=pltpu.CompilerParams(
            dimension_semantics=("parallel",),          # megacore on v7x
            vmem_limit_bytes=32 * 1024 * 1024,          # tiny footprint; fits v7x 64 MiB
        ),
    )(x_p, *w_pad, b_cat)

    return out[:B, :1]  # strip lane/batch padding -> (B, 1) logit


def make_params(key, z_size, filters, use_bias):
    """Deterministic synthetic parameter init (normal(0, 0.02), zero bias)."""
    dims = [z_size] + list(filters) + [1]
    weights, biases = [], []
    for i in range(len(dims) - 1):
        key, wk = jax.random.split(key)
        w = 0.02 * jax.random.normal(wk, (dims[i], dims[i + 1]), jnp.float32)
        b = jnp.zeros((1, dims[i + 1]), jnp.float32)  # zero bias == no bias
        weights.append(w)
        biases.append(b)
    return weights, biases


def reference_forward(x, weights, biases, relu_slope):
    h = x
    for i, (w, b) in enumerate(zip(weights, biases)):
        h = h @ w + b
        if i < len(weights) - 1:
            if relu_slope > 0.0:
                h = jnp.where(h > 0, h, relu_slope * h)
            else:
                h = jnp.maximum(h, 0.0)
    return h


if __name__ == "__main__":
    # Small hparams consistent with the module:
    #   latent_dim=32, discriminator_filters=(64, 32),
    #   use_discriminator_bias=True, discriminator_relu_slope=0.2
    B = 8
    z_size = 32
    filters = (64, 32)
    relu_slope = 0.2
    use_bias = True

    key = jax.random.PRNGKey(0)
    key, xk = jax.random.split(key)
    x = jax.random.normal(xk, (B, z_size), jnp.float32)

    weights, biases = make_params(key, z_size, filters, use_bias)

    logit = discriminator_forward(x, weights, biases, relu_slope)
    logit = jax.block_until_ready(logit)

    ref = reference_forward(x, weights, biases, relu_slope)
    assert logit.shape == (B, 1), logit.shape
    # bf16 activations/weights with f32 accumulation -> small numeric delta vs f32 ref.
    max_err = float(jnp.max(jnp.abs(logit - ref)))
    assert max_err < 2e-3, (max_err, logit, ref)

    print("KERNEL_OK")
</pallas_src>

<mosaic_0001>
module attributes {stable_mosaic.version = 11 : i64} {
  func.func @_discriminator_kernel(%arg0: i32, %arg1: memref<8x128xbf16, #tpu.memory_space<vmem>>, %arg2: memref<128x128xbf16, #tpu.memory_space<vmem>>, %arg3: memref<128x128xbf16, #tpu.memory_space<vmem>>, %arg4: memref<128x128xbf16, #tpu.memory_space<vmem>>, %arg5: memref<1x384xf32, #tpu.memory_space<vmem>>, %arg6: memref<8x128xf32, #tpu.memory_space<vmem>>) attributes {dimension_semantics = [#tpu.dimension_semantics<parallel>], iteration_bounds = array<i64: 1>, scalar_prefetch = 0 : i64, scratch_operands = 0 : i64, tpu.core_type = #tpu.core_type<tc>, window_params = [{transform_indices = @transform_0, window_bounds = array<i64: 8, 128>}, {pipeline_mode = #tpu.pipeline_mode<synchronous>, transform_indices = @transform_1, window_bounds = array<i64: 128, 128>}, {pipeline_mode = #tpu.pipeline_mode<synchronous>, transform_indices = @transform_2, window_bounds = array<i64: 128, 128>}, {pipeline_mode = #tpu.pipeline_mode<synchronous>, transform_indices = @transform_3, window_bounds = array<i64: 128, 128>}, {pipeline_mode = #tpu.pipeline_mode<synchronous>, transform_indices = @transform_4, window_bounds = array<i64: 1, 384>}, {transform_indices = @transform_5, window_bounds = array<i64: 8, 128>}]} {
    %c0 = arith.constant 0 : index
    %c0_0 = arith.constant 0 : index
    %0 = vector.load %arg1[%c0, %c0_0] : memref<8x128xbf16, #tpu.memory_space<vmem>>, vector<8x128xbf16>
    %c0_1 = arith.constant 0 : index
    %c0_2 = arith.constant 0 : index
    %1 = vector.load %arg2[%c0_1, %c0_2] : memref<128x128xbf16, #tpu.memory_space<vmem>>, vector<128x128xbf16>
    %cst = arith.constant dense<0.000000e+00> : vector<8x128xf32>
    %2 = tpu.matmul %0, %1, %cst {dimension_numbers = #tpu.dot_dimension_numbers<[1], [0], [0], [1], [0, 0, 1, 1], [], []>} : vector<8x128xbf16>, vector<128x128xbf16>, vector<8x128xf32> -> vector<8x128xf32>
    %c0_3 = arith.constant 0 : index
    %c0_4 = arith.constant 0 : index
    %3 = vector.load %arg5[%c0_3, %c0_4] : memref<1x384xf32, #tpu.memory_space<vmem>>, vector<1x128xf32>
    %4 = vector.broadcast %3 : vector<1x128xf32> to vector<8x128xf32>
    %5 = arith.addf %2, %4 : vector<8x128xf32>
    %cst_5 = arith.constant 0.000000e+00 : f32
    %6 = vector.broadcast %cst_5 : f32 to vector<8x128xf32>
    %7 = arith.cmpf ogt, %5, %6 : vector<8x128xf32>
    %cst_6 = arith.constant 2.000000e-01 : f32
    %8 = vector.broadcast %cst_6 : f32 to vector<8x128xf32>
    %9 = arith.mulf %8, %5 : vector<8x128xf32>
    %10 = arith.select %7, %5, %9 : vector<8x128xi1>, vector<8x128xf32>
    %11 = arith.truncf %10 : vector<8x128xf32> to vector<8x128xbf16>
    %c0_7 = arith.constant 0 : index
    %c0_8 = arith.constant 0 : index
    %12 = vector.load %arg3[%c0_7, %c0_8] : memref<128x128xbf16, #tpu.memory_space<vmem>>, vector<128x128xbf16>
    %cst_9 = arith.constant dense<0.000000e+00> : vector<8x128xf32>
    %13 = tpu.matmul %11, %12, %cst_9 {dimension_numbers = #tpu.dot_dimension_numbers<[1], [0], [0], [1], [0, 0, 1, 1], [], []>} : vector<8x128xbf16>, vector<128x128xbf16>, vector<8x128xf32> -> vector<8x128xf32>
    %c0_10 = arith.constant 0 : index
    %c128 = arith.constant 128 : index
    %14 = vector.load %arg5[%c0_10, %c128] : memref<1x384xf32, #tpu.memory_space<vmem>>, vector<1x128xf32>
    %15 = vector.broadcast %14 : vector<1x128xf32> to vector<8x128xf32>
    %16 = arith.addf %13, %15 : vector<8x128xf32>
    %cst_11 = arith.constant 0.000000e+00 : f32
    %17 = vector.broadcast %cst_11 : f32 to vector<8x128xf32>
    %18 = arith.cmpf ogt, %16, %17 : vector<8x128xf32>
    %cst_12 = arith.constant 2.000000e-01 : f32
    %19 = vector.broadcast %cst_12 : f32 to vector<8x128xf32>
    %20 = arith.mulf %19, %16 : vector<8x128xf32>
    %21 = arith.select %18, %16, %20 : vector<8x128xi1>, vector<8x128xf32>
    %22 = arith.truncf %21 : vector<8x128xf32> to vector<8x128xbf16>
    %c0_13 = arith.constant 0 : index
    %c0_14 = arith.constant 0 : index
    %23 = vector.load %arg4[%c0_13, %c0_14] : memref<128x128xbf16, #tpu.memory_space<vmem>>, vector<128x128xbf16>
    %cst_15 = arith.constant dense<0.000000e+00> : vector<8x128xf32>
    %24 = tpu.matmul %22, %23, %cst_15 {dimension_numbers = #tpu.dot_dimension_numbers<[1], [0], [0], [1], [0, 0, 1, 1], [], []>} : vector<8x128xbf16>, vector<128x128xbf16>, vector<8x128xf32> -> vector<8x128xf32>
    %c0_16 = arith.constant 0 : index
    %c256 = arith.constant 256 : index
    %25 = vector.load %arg5[%c0_16, %c256] : memref<1x384xf32, #tpu.memory_space<vmem>>, vector<1x128xf32>
    %26 = vector.broadcast %25 : vector<1x128xf32> to vector<8x128xf32>
    %27 = arith.addf %24, %26 : vector<8x128xf32>
    %c0_17 = arith.constant 0 : index
    %c0_18 = arith.constant 0 : index
    %28 = vector.load %arg6[%c0_17, %c0_18] : memref<8x128xf32, #tpu.memory_space<vmem>>, vector<8x128xf32>
    tpu.vector_store %arg6[%c0_17, %c0_18], %27 {strides = array<i32>} : memref<8x128xf32, #tpu.memory_space<vmem>>, vector<8x128xf32>,
    return
  }
  func.func @transform_0(%arg0: i32) -> (i32, i32) {
    %c0_i32 = arith.constant 0 : i32
    %c0_i32_0 = arith.constant 0 : i32
    return %arg0, %c0_i32 : i32, i32
  }
  func.func @transform_1(%arg0: i32) -> (i32, i32) {
    %c0_i32 = arith.constant 0 : i32
    %c0_i32_0 = arith.constant 0 : i32
    %c0_i32_1 = arith.constant 0 : i32
    return %c0_i32, %c0_i32_0 : i32, i32
  }
  func.func @transform_2(%arg0: i32) -> (i32, i32) {
    %c0_i32 = arith.constant 0 : i32
    %c0_i32_0 = arith.constant 0 : i32
    %c0_i32_1 = arith.constant 0 : i32
    return %c0_i32, %c0_i32_0 : i32, i32
  }
  func.func @transform_3(%arg0: i32) -> (i32, i32) {
    %c0_i32 = arith.constant 0 : i32
    %c0_i32_0 = arith.constant 0 : i32
    %c0_i32_1 = arith.constant 0 : i32
    return %c0_i32, %c0_i32_0 : i32, i32
  }
  func.func @transform_4(%arg0: i32) -> (i32, i32) {
    %c0_i32 = arith.constant 0 : i32
    %c0_i32_0 = arith.constant 0 : i32
    %c0_i32_1 = arith.constant 0 : i32
    return %c0_i32, %c0_i32_0 : i32, i32
  }
  func.func @transform_5(%arg0: i32) -> (i32, i32) {
    %c0_i32 = arith.constant 0 : i32
    %c0_i32_0 = arith.constant 0 : i32
    return %arg0, %c0_i32 : i32, i32
  }
}

</mosaic_0001>

<llo_original>
// kernel: tpu_custom_call.1
$region0: #{tpu_custom_call.1}
  #allocation0 [shape = 'u32[]', space=smem, size = 0x4, offset = 0x4, fixed_abs, tag = 'smem constant byte address 0x4 - core index']
  #allocation1 [shape = 'u32[72,128]{1,0:T(1,128)}', space=vmem, size = 0x9000, scoped, tag = 'internal scratch']
  %s0 = inlined_call_operand.hbm [shape: bf16[8,128], index: 0, kind: input, shape index: {}]
  %s1 = inlined_call_operand.hbm [shape: bf16[128,128], index: 1, kind: input, shape index: {}]
  %s2 = inlined_call_operand.hbm [shape: bf16[128,128], index: 2, kind: input, shape index: {}]
  %s3 = inlined_call_operand.hbm [shape: bf16[128,128], index: 3, kind: input, shape index: {}]
  %s4 = inlined_call_operand.vmem [shape: f32[1,384], index: 4, kind: input, shape index: {}]
  %s5 = inlined_call_operand.hbm [shape: f32[8,128], index: 5, kind: output, shape index: {}]
  %s6 = sld [smem:[#allocation0]]
  $region46: #{tpu_custom_call.1} parent=0
    _
  %s8 = ssub.s32 1, %s6
  %s9 = scalar_select 0, %s8, %s6
  $region1: #{tpu_custom_call.1} parent=0
    #allocation2 [shape = 'u8[2048]{0}', space=vmem, size = 0x800, scoped, tag = 'input window, operand 0, single buffered']
    #allocation3 [shape = 's32[1]{0}', space=sflag, size = 0x4, scoped, tag = 'scoped memory for tpu_custom_call.1']
    #allocation4 [shape = 's32[1]{0}', space=sflag, size = 0x4, scoped, tag = 'scoped memory for tpu_custom_call.1']
    #allocation5 [shape = 'u8[32768]{0}', space=vmem, size = 0x8000, scoped, tag = 'input window, operand 1, single buffered']
    #allocation6 [shape = 's32[1]{0}', space=sflag, size = 0x4, scoped, tag = 'scoped memory for tpu_custom_call.1']
    #allocation7 [shape = 'u8[32768]{0}', space=vmem, size = 0x8000, scoped, tag = 'input window, operand 2, single buffered']
    #allocation8 [shape = 'u8[32768]{0}', space=vmem, size = 0x8000, scoped, tag = 'input window, operand 3, single buffered']
    #allocation9 [shape = 's32[1]{0}', space=sflag, size = 0x4, scoped, tag = 'scoped memory for tpu_custom_call.1']
    #allocation10 [shape = 'u8[4096]{0}', space=vmem, size = 0x1000, scoped, tag = 'output window, operand 0, single buffered']
    %10 = vsyncpa [#allocation3], 0
    %11 = vsyncpa [#allocation6], 0
    %12 = vsyncpa [#allocation9], 0
    %13 = vsyncpa [#allocation4], 0
    // Predicated region
    $region2: #{tpu_custom_call.1} parent=1 // pred_check
      _
    $region3: #{tpu_custom_call.1} parent=1 // pred_check_branch
      %15 = sbr.rel (0) target = $region5
    $region4: #{tpu_custom_call.1} parent=1 // pred_region
      %17 = vsyncadd [#allocation3], 0
      %s19 = sshll.u32 %s0, 4
      %s20 = int_to_ptr.hbm [resolvable:$true] %s19
      %s21 = sshll.u32 [#allocation2], 4
      %s22 = int_to_ptr.vmem [resolvable:$true] %s21
      %24 = dma.hbm_to_vmem [thread:$0]  %s20, 64, %s22, [#allocation3]
    $region5: #{tpu_custom_call.1} parent=1 // pred_fallthru
      _
    // Predicated region
    $region6: #{tpu_custom_call.1} parent=1 // pred_check
      _
    $region7: #{tpu_custom_call.1} parent=1 // pred_check_branch
      %26 = sbr.rel (0) target = $region9
    $region8: #{tpu_custom_call.1} parent=1 // pred_region
      %28 = vsyncadd [#allocation6], 0
      %s29 = sshll.u32 %s1, 4
      %s30 = int_to_ptr.hbm [resolvable:$true] %s29
      %s31 = sshll.u32 [#allocation5], 4
      %s32 = int_to_ptr.vmem [resolvable:$true] %s31
      %37 = dma.hbm_to_vmem [thread:$0]  %s30, 1024, %s32, [#allocation6], 64, 64, 4
    $region9: #{tpu_custom_call.1} parent=1 // pred_fallthru
      _
    // Predicated region
    $region10: #{tpu_custom_call.1} parent=1 // pred_check
      _
    $region11: #{tpu_custom_call.1} parent=1 // pred_check_branch
      %39 = sbr.rel (0) target = $region13
    $region12: #{tpu_custom_call.1} parent=1 // pred_region
      %41 = vsyncadd [#allocation6], 0
      %s42 = sshll.u32 %s2, 4
      %s43 = int_to_ptr.hbm [resolvable:$true] %s42
      %s44 = sshll.u32 [#allocation7], 4
      %s45 = int_to_ptr.vmem [resolvable:$true] %s44
      %50 = dma.hbm_to_vmem [thread:$0]  %s43, 1024, %s45, [#allocation6], 64, 64, 4
    $region13: #{tpu_custom_call.1} parent=1 // pred_fallthru
      _
    // Predicated region
    $region14: #{tpu_custom_call.1} parent=1 // pred_check
      _
    $region15: #{tpu_custom_call.1} parent=1 // pred_check_branch
      %52 = sbr.rel (0) target = $region17
    $region16: #{tpu_custom_call.1} parent=1 // pred_region
      %54 = vsyncadd [#allocation9], 0
      %s55 = sshll.u32 %s3, 4
      %s56 = int_to_ptr.hbm [resolvable:$true] %s55
      %s57 = sshll.u32 [#allocation8], 4
      %s58 = int_to_ptr.vmem [resolvable:$true] %s57
      %63 = dma.hbm_to_vmem [thread:$0]  %s56, 1024, %s58, [#allocation9], 64, 64, 4
    $region17: #{tpu_custom_call.1} parent=1 // pred_fallthru
      _
    // Predicated region
    $region18: #{tpu_custom_call.1} parent=1 // pred_check
      _
    $region19: #{tpu_custom_call.1} parent=1 // pred_check_branch
      %65 = sbr.rel (0) target = $region21
    $region20: #{tpu_custom_call.1} parent=1 // pred_region
      _
    $region21: #{tpu_custom_call.1} parent=1 // pred_fallthru
      _
    // Predicated region
    $region22: #{tpu_custom_call.1} parent=1 // pred_check
      _
    $region23: #{tpu_custom_call.1} parent=1 // pred_check_branch
      %67 = sbr.rel (0) target = $region25
    $region24: #{tpu_custom_call.1} parent=1 // pred_region
      %69 = dma.done [#allocation3], 64
    $region25: #{tpu_custom_call.1} parent=1 // pred_fallthru
      _
    // Predicated region
    $region26: #{tpu_custom_call.1} parent=1 // pred_check
      _
    $region27: #{tpu_custom_call.1} parent=1 // pred_check_branch
      %71 = sbr.rel (0) target = $region29
    $region28: #{tpu_custom_call.1} parent=1 // pred_region
      %73 = dma.done [#allocation6], 1024
    $region29: #{tpu_custom_call.1} parent=1 // pred_fallthru
      _
    // Predicated region
    $region30: #{tpu_custom_call.1} parent=1 // pred_check
      _
    $region31: #{tpu_custom_call.1} parent=1 // pred_check_branch
      %75 = sbr.rel (0) target = $region33
    $region32: #{tpu_custom_call.1} parent=1 // pred_region
      %77 = dma.done [#allocation6], 1024
    $region33: #{tpu_custom_call.1} parent=1 // pred_fallthru
      _
    // Predicated region
    $region34: #{tpu_custom_call.1} parent=1 // pred_check
      _
    $region35: #{tpu_custom_call.1} parent=1 // pred_check_branch
      %79 = sbr.rel (0) target = $region37
    $region36: #{tpu_custom_call.1} parent=1 // pred_region
      %81 = dma.done [#allocation9], 1024
    $region37: #{tpu_custom_call.1} parent=1 // pred_fallthru
      _
    %v82 = vld [vmem:[#allocation2] sm:$0xf]
    %v83 = vld [vmem:[#allocation5] sm:$0xf]
    %v84 = vld [vmem:[#allocation5 + $0x4] sm:$0xf]
    %v85 = vld [vmem:[#allocation5 + $0x8] sm:$0xf]
    %v86 = vld [vmem:[#allocation5 + $0xc] sm:$0xf]
    %v87 = vld [vmem:[#allocation5 + $0x10] sm:$0xf]
    %v88 = vld [vmem:[#allocation5 + $0x14] sm:$0xf]
    %v89 = vld [vmem:[#allocation5 + $0x18] sm:$0xf]
    %v90 = vld [vmem:[#allocation5 + $0x1c] sm:$0xf]
    %v91 = vld [vmem:[#allocation5 + $0x20] sm:$0xf]
    %v92 = vld [vmem:[#allocation5 + $0x24] sm:$0xf]
    %v93 = vld [vmem:[#allocation5 + $0x28] sm:$0xf]
    %v94 = vld [vmem:[#allocation5 + $0x2c] sm:$0xf]
    %v95 = vld [vmem:[#allocation5 + $0x30] sm:$0xf]
    %v96 = vld [vmem:[#allocation5 + $0x34] sm:$0xf]
    %v97 = vld [vmem:[#allocation5 + $0x38] sm:$0xf]
    %v98 = vld [vmem:[#allocation5 + $0x3c] sm:$0xf]
    %v99 = vld [vmem:[%s4] sm:$0x1]
    %v101 = vperm.slane %v99, 0
    %v119 = vunpack.c.l.b16 %v83
    %v120 = vunpack.c.l.b16 %v84
    %v121 = vunpack.c.l.b16 %v85
    %v122 = vunpack.c.l.b16 %v86
    %v123 = vunpack.c.l.b16 %v87
    %v124 = vunpack.c.l.b16 %v88
    %v125 = vunpack.c.l.b16 %v89
    %v126 = vunpack.c.l.b16 %v90
    %v127 = vunpack.c.l.b16 %v91
    %v128 = vunpack.c.l.b16 %v92
    %v129 = vunpack.c.l.b16 %v93
    %v130 = vunpack.c.l.b16 %v94
    %v131 = vunpack.c.l.b16 %v95
    %v132 = vunpack.c.l.b16 %v96
    %v133 = vunpack.c.l.b16 %v97
    %v134 = vunpack.c.l.b16 %v98
    %v135 = vpack.c.b16 %v120, %v119
    %v136 = vpack.c.b16 %v122, %v121
    %v137 = vpack.c.b16 %v124, %v123
    %v138 = vpack.c.b16 %v126, %v125
    %v139 = vpack.c.b16 %v128, %v127
    %v140 = vpack.c.b16 %v130, %v129
    %v141 = vpack.c.b16 %v132, %v131
    %v142 = vpack.c.b16 %v134, %v133
    %151 = vmatpush.bf16.msra.mxu0 %v142
    %152 = vmatpush.bf16.msra.mxu0 %v141
    %153 = vmatpush.bf16.msra.mxu0 %v140
    %154 = vmatpush.bf16.msra.mxu0 %v139
    %155 = vmatpush.bf16.msra.mxu0 %v138
    %156 = vmatpush.bf16.msra.mxu0 %v137
    %157 = vmatpush.bf16.msra.mxu0 %v136
    %158 = vmatpush.bf16.msra.mxu0 %v135
    %159 = vmatmul.bf16.gmra.mxu0 %v82
    %v160 = vpop.f32.mrf.mxu0
    %v161 = vadd.f32 %v101, %v160
    %v162 = vpop.f32.mrf.mxu0
    %163 = vdwg.mxu0
    %vm164 = vcmp.gt.f32.partialorder %v161, 0.0
    %v165 = vmul.f32 %v161, 0.2
    %v166 = vsel %vm164, %v161, %v165
    %v167 = vpack.c.bf16 %v166, %v166
    %v168 = vld [vmem:[#allocation7] sm:$0xf]
    %v169 = vld [vmem:[#allocation7 + $0x4] sm:$0xf]
    %v170 = vld [vmem:[#allocation7 + $0x8] sm:$0xf]
    %v171 = vld [vmem:[#allocation7 + $0xc] sm:$0xf]
    %v172 = vld [vmem:[#allocation7 + $0x10] sm:$0xf]
    %v173 = vld [vmem:[#allocation7 + $0x14] sm:$0xf]
    %v174 = vld [vmem:[#allocation7 + $0x18] sm:$0xf]
    %v175 = vld [vmem:[#allocation7 + $0x1c] sm:$0xf]
    %v176 = vld [vmem:[#allocation7 + $0x20] sm:$0xf]
    %v177 = vld [vmem:[#allocation7 + $0x24] sm:$0xf]
    %v178 = vld [vmem:[#allocation7 + $0x28] sm:$0xf]
    %v179 = vld [vmem:[#allocation7 + $0x2c] sm:$0xf]
    %v180 = vld [vmem:[#allocation7 + $0x30] sm:$0xf]
    %v181 = vld [vmem:[#allocation7 + $0x34] sm:$0xf]
    %v182 = vld [vmem:[#allocation7 + $0x38] sm:$0xf]
    %v183 = vld [vmem:[#allocation7 + $0x3c] sm:$0xf]
    %v184 = vld [vmem:[%s4 + $0x1] sm:$0x1]
    %v186 = vperm.slane %v184, 0
    %v204 = vunpack.c.l.b16 %v168
    %v205 = vunpack.c.l.b16 %v169
    %v206 = vunpack.c.l.b16 %v170
    %v207 = vunpack.c.l.b16 %v171
    %v208 = vunpack.c.l.b16 %v172
    %v209 = vunpack.c.l.b16 %v173
    %v210 = vunpack.c.l.b16 %v174
    %v211 = vunpack.c.l.b16 %v175
    %v212 = vunpack.c.l.b16 %v176
    %v213 = vunpack.c.l.b16 %v177
    %v214 = vunpack.c.l.b16 %v178
    %v215 = vunpack.c.l.b16 %v179
    %v216 = vunpack.c.l.b16 %v180
    %v217 = vunpack.c.l.b16 %v181
    %v218 = vunpack.c.l.b16 %v182
    %v219 = vunpack.c.l.b16 %v183
    %v220 = vpack.c.b16 %v205, %v204
    %v221 = vpack.c.b16 %v207, %v206
    %v222 = vpack.c.b16 %v209, %v208
    %v223 = vpack.c.b16 %v211, %v210
    %v224 = vpack.c.b16 %v213, %v212
    %v225 = vpack.c.b16 %v215, %v214
    %v226 = vpack.c.b16 %v217, %v216
    %v227 = vpack.c.b16 %v219, %v218
    %236 = vmatpush.bf16.msra.mxu0 %v227
    %237 = vmatpush.bf16.msra.mxu0 %v226
    %238 = vmatpush.bf16.msra.mxu0 %v225
    %239 = vmatpush.bf16.msra.mxu0 %v224
    %240 = vmatpush.bf16.msra.mxu0 %v223
    %241 = vmatpush.bf16.msra.mxu0 %v222
    %242 = vmatpush.bf16.msra.mxu0 %v221
    %243 = vmatpush.bf16.msra.mxu0 %v220
    %244 = vmatmul.bf16.gmra.mxu0 %v167
    %v245 = vpop.f32.mrf.mxu0
    %v246 = vadd.f32 %v186, %v245
    %v247 = vpop.f32.mrf.mxu0
    %248 = vdwg.mxu0
    %vm249 = vcmp.gt.f32.partialorder %v246, 0.0
    %v250 = vmul.f32 %v246, 0.2
    %v251 = vsel %vm249, %v246, %v250
    %v252 = vpack.c.bf16 %v251, %v251
    %v253 = vld [vmem:[#allocation8] sm:$0xf]
    %v254 = vld [vmem:[#allocation8 + $0x4] sm:$0xf]
    %v255 = vld [vmem:[#allocation8 + $0x8] sm:$0xf]
    %v256 = vld [vmem:[#allocation8 + $0xc] sm:$0xf]
    %v257 = vld [vmem:[#allocation8 + $0x10] sm:$0xf]
    %v258 = vld [vmem:[#allocation8 + $0x14] sm:$0xf]
    %v259 = vld [vmem:[#allocation8 + $0x18] sm:$0xf]
    %v260 = vld [vmem:[#allocation8 + $0x1c] sm:$0xf]
    %v261 = vld [vmem:[#allocation8 + $0x20] sm:$0xf]
    %v262 = vld [vmem:[#allocation8 + $0x24] sm:$0xf]
    %v263 = vld [vmem:[#allocation8 + $0x28] sm:$0xf]
    %v264 = vld [vmem:[#allocation8 + $0x2c] sm:$0xf]
    %v265 = vld [vmem:[#allocation8 + $0x30] sm:$0xf]
    %v266 = vld [vmem:[#allocation8 + $0x34] sm:$0xf]
    %v267 = vld [vmem:[#allocation8 + $0x38] sm:$0xf]
    %v268 = vld [vmem:[#allocation8 + $0x3c] sm:$0xf]
    %v269 = vld [vmem:[%s4 + $0x2] sm:$0x1]
    %v271 = vperm.slane %v269, 0
    %v289 = vunpack.c.l.b16 %v253
    %v290 = vunpack.c.l.b16 %v254
    %v291 = vunpack.c.l.b16 %v255
    %v292 = vunpack.c.l.b16 %v256
    %v293 = vunpack.c.l.b16 %v257
    %v294 = vunpack.c.l.b16 %v258
    %v295 = vunpack.c.l.b16 %v259
    %v296 = vunpack.c.l.b16 %v260
    %v297 = vunpack.c.l.b16 %v261
    %v298 = vunpack.c.l.b16 %v262
    %v299 = vunpack.c.l.b16 %v263
    %v300 = vunpack.c.l.b16 %v264
    %v301 = vunpack.c.l.b16 %v265
    %v302 = vunpack.c.l.b16 %v266
    %v303 = vunpack.c.l.b16 %v267
    %v304 = vunpack.c.l.b16 %v268
    %v305 = vpack.c.b16 %v290, %v289
    %v306 = vpack.c.b16 %v292, %v291
    %v307 = vpack.c.b16 %v294, %v293
    %v308 = vpack.c.b16 %v296, %v295
    %v309 = vpack.c.b16 %v298, %v297
    %v310 = vpack.c.b16 %v300, %v299
    %v311 = vpack.c.b16 %v302, %v301
    %v312 = vpack.c.b16 %v304, %v303
    %321 = vmatpush.bf16.msra.mxu0 %v312
    %322 = vmatpush.bf16.msra.mxu0 %v311
    %323 = vmatpush.bf16.msra.mxu0 %v310
    %324 = vmatpush.bf16.msra.mxu0 %v309
    %325 = vmatpush.bf16.msra.mxu0 %v308
    %326 = vmatpush.bf16.msra.mxu0 %v307
    %327 = vmatpush.bf16.msra.mxu0 %v306
    %328 = vmatpush.bf16.msra.mxu0 %v305
    %329 = vmatmul.bf16.gmra.mxu0 %v252
    %v330 = vpop.f32.mrf.mxu0
    %v331 = vadd.f32 %v271, %v330
    %v332 = vpop.f32.mrf.mxu0
    %333 = vdwg.mxu0
    %334 = vst [vmem:[#allocation10] sm:$0xff] %v331
    // Predicated region
    $region38: #{tpu_custom_call.1} parent=1 // pred_check
      _
    $region39: #{tpu_custom_call.1} parent=1 // pred_check_branch
      %336 = sbr.rel (0) target = $region41
    $region40: #{tpu_custom_call.1} parent=1 // pred_region
      %338 = vsyncadd [#allocation4], 0
      %s340 = sshll.u32 [#allocation10], 4
      %s341 = int_to_ptr.vmem [resolvable:$true] %s340
      %s342 = sshll.u32 %s5, 4
      %s343 = int_to_ptr.hbm [resolvable:$true] %s342
      %345 = dma.vmem_to_hbm [thread:$0]  %s341, 128, %s343, [#allocation4]
    $region41: #{tpu_custom_call.1} parent=1 // pred_fallthru
      _
    // Predicated region
    $region42: #{tpu_custom_call.1} parent=1 // pred_check
      _
    $region43: #{tpu_custom_call.1} parent=1 // pred_check_branch
      %347 = sbr.rel (0) target = $region45
    $region44: #{tpu_custom_call.1} parent=1 // pred_region
      %349 = dma.done [#allocation4], 128
    $region45: #{tpu_custom_call.1} parent=1 // pred_fallthru
      _
    %350 = vsyncpa [#allocation3], 1
    %351 = vsyncpa [#allocation6], 1
    %352 = vsyncpa [#allocation9], 1
    %353 = vsyncpa [#allocation4], 1

</llo_original>
